<compile_context>
chip_gen: v6e
topology: v6e:2x2x1
jax: 0.10.0
libtpu: 0.0.40
codegen_flags: <defaults>
</compile_context>

<pallas_src>
import functools

import numpy as np
import jax
import jax.numpy as jnp
from jax.experimental import pallas as pl
from jax.experimental.pallas import tpu as pltpu

NEG_SLOPE = 0.01   # LeakyReLU negative_slope
EPS = 1e-5         # InstanceNorm3d default eps


# --------------------------------------------------------------------------------------
# pltpu.roll shift-convention probe (resolved once, outside the main trace)
# --------------------------------------------------------------------------------------
_ROLL_SIGN = None


def _roll_probe_kernel(x_ref, o_ref):
    o_ref[...] = pltpu.roll(x_ref[...], 3, axis=1)


def _calibrate_roll_sign():
    """Resolve pltpu.roll's shift convention once; +1 means it matches np.roll."""
    global _ROLL_SIGN
    if _ROLL_SIGN is not None:
        return _ROLL_SIGN
    with jax.ensure_compile_time_eval():
        x = jnp.arange(256, dtype=jnp.float32).reshape(1, 256)
        out = np.asarray(
            pl.pallas_call(
                _roll_probe_kernel,
                out_shape=jax.ShapeDtypeStruct((1, 256), jnp.float32),
            )(x)
        )
        xs = np.asarray(x)
    if np.array_equal(out, np.roll(xs, 3, axis=1)):
        _ROLL_SIGN = 1
    elif np.array_equal(out, np.roll(xs, -3, axis=1)):
        _ROLL_SIGN = -1
    else:
        raise RuntimeError("unexpected pltpu.roll semantics")
    return _ROLL_SIGN


# --------------------------------------------------------------------------------------
# Static helpers (host-side, tiny)
# --------------------------------------------------------------------------------------
def _round_up(x, m):
    return (x + m - 1) // m * m


def _conv_weight_groups(w, kg_pad, dtype):
    """PyTorch (Cout, Cin, 3, 3, 3) -> (3, Cout, kg_pad).

    Group g is the kd-plane; within a group, columns are (kh, kw)-major / cin-minor,
    matching the im2col row layout built in the kernel. K-padding columns are zero.
    """
    cout, cin = w.shape[0], w.shape[1]
    wm = jnp.transpose(w, (0, 2, 3, 4, 1)).reshape(cout, 3, 9 * cin)
    wm = jnp.transpose(wm, (1, 0, 2))                       # (3, cout, 9*cin)
    if kg_pad > 9 * cin:
        wm = jnp.pad(wm, ((0, 0), (0, 0), (0, kg_pad - 9 * cin)))
    return wm.astype(dtype)


# --------------------------------------------------------------------------------------
# Fused ConvBlock kernel: conv0 + IN + LeakyReLU + conv1 + IN + LeakyReLU, one sample/step
# --------------------------------------------------------------------------------------
def _convblock_kernel(x_ref, w0_ref, w1_ref, par_ref, o_ref, p_ref, *,
                      d, h, w, cin, cout, kg0_pad, kg1_pad, group_taps):
    s = x_ref.shape[-1]
    od = p_ref.dtype

    # Boundary masks generated in-kernel (removes the (27, S) HBM mask input):
    # decompose the flat lane index into (d, h, w) and build the six axis predicates once.
    lane = jax.lax.broadcasted_iota(jnp.int32, (1, s), 1)
    dpos = lane // (h * w)
    hpos = (lane // w) % h
    wpos = lane % w
    axis_masks = {
        ("d", -1): dpos >= 1, ("d", 1): dpos < d - 1,
        ("h", -1): hpos >= 1, ("h", 1): hpos < h - 1,
        ("w", -1): wpos >= 1, ("w", 1): wpos < w - 1,
    }

    def tap_mask(kd, kh, kw):
        m = None
        for name, off in (("d", kd), ("h", kh), ("w", kw)):
            if off != 0:
                am = axis_masks[(name, off)]
                m = am if m is None else jnp.logical_and(m, am)
        return m

    par = par_ref[...]   # (cout, 8) f32: [b0, g0, be0, b1, g1, be1, 0, 0]

    def build_group(src, gi, c):
        # im2col rows for one kd-plane (9 taps): lane roll + boundary zeroing, all in operand dtype.
        for t, (shift, kd, kh, kw) in enumerate(group_taps[gi]):
            shifted = pltpu.roll(src, shift, axis=1) if shift else src
            m = tap_mask(kd, kh, kw)
            patch = shifted if m is None else jnp.where(m, shifted, jnp.zeros((), od))
            p_ref[t * c:(t + 1) * c, :] = patch

    def conv_norm_act(src, w_ref, c, kg_pad, pcol):
        # Load-bearing zero: K-padding rows must be 0 (0-weight x NaN = NaN through the MXU).
        # With kd-plane grouping the pad region is < 8 rows, so this per-layer re-zero is
        # negligible (and required, since the other layer dirties the shared scratch rows).
        if kg_pad > 9 * c:
            p_ref[9 * c:kg_pad, :] = jnp.zeros((kg_pad - 9 * c, s), od)
        acc = None
        for gi in range(3):                    # 3 matmuls of K = 9*c, f32 accumulation
            build_group(src, gi, c)
            part = jnp.dot(w_ref[gi], p_ref[0:kg_pad, :],
                           preferred_element_type=jnp.float32)
            acc = part if acc is None else acc + part
        b, gamma, beta = (par[:, pcol + j:pcol + j + 1] for j in range(3))
        y = acc + b                                           # conv bias
        # Single-pass InstanceNorm stats in f32: var = E[y^2] - mean^2.
        mean = jnp.mean(y, axis=1, keepdims=True)
        var = jnp.maximum(jnp.mean(y * y, axis=1, keepdims=True) - mean * mean, 0.0)
        scale = jax.lax.rsqrt(var + EPS) * gamma              # gamma folded into the scale
        shift = beta - mean * scale
        y = y * scale + shift
        return jnp.maximum(y, NEG_SLOPE * y)                  # LeakyReLU(0.01)

    x = x_ref[0].astype(od)                                   # (Cin, S), cast once
    h0 = conv_norm_act(x, w0_ref, cin, kg0_pad, 0).astype(od)  # cast h0 once -> bf16 patch build
    h1 = conv_norm_act(h0, w1_ref, cout, kg1_pad, 3)
    o_ref[0] = h1.astype(o_ref.dtype)


def convblock_forward(x, params, *, operand_dtype=jnp.bfloat16, out_dtype=jnp.float32):
    """x: (N, Cin, D, H, W) f32 -> (N, Cout, D, H, W) out_dtype (PyTorch NCDHW layout).

    operand_dtype: MXU / patch-build dtype. bf16 on v6e/v7x; use f32 on v5e (no bf16 VPU).
    """
    n, cin, d, h, w = x.shape
    cout = params["conv0_w"].shape[0]
    s = d * h * w
    roll_sign = _calibrate_roll_sign()

    # Per-tap lane shifts grouped by kd-plane (matches the grouped weight-column layout).
    # result[s] = src[s + delta]  ==  np.roll(src, -delta); adjust for roll convention.
    group_taps = []
    for kd in (-1, 0, 1):
        taps = []
        for kh in (-1, 0, 1):
            for kw in (-1, 0, 1):
                delta = kd * h * w + kh * w + kw
                taps.append(((roll_sign * (-delta)) % s, kd, kh, kw))
        group_taps.append(tuple(taps))
    group_taps = tuple(group_taps)

    # kd-plane grouping: 3 matmuls of K=9*C instead of one K=27*C -> 3x smaller im2col scratch.
    kg0_pad = _round_up(9 * cin, 8)
    kg1_pad = _round_up(9 * cout, 8)
    kg_max = max(kg0_pad, kg1_pad)     # both layers share one scratch (lifetimes don't overlap)

    w0 = _conv_weight_groups(params["conv0_w"], kg0_pad, operand_dtype)
    w1 = _conv_weight_groups(params["conv1_w"], kg1_pad, operand_dtype)
    # Conv bias + InstanceNorm affine for both layers packed into one small f32 operand.
    par = jnp.zeros((cout, 8), jnp.float32)
    for j, k in enumerate(("conv0_b", "norm0_g", "norm0_b", "conv1_b", "norm1_g", "norm1_b")):
        par = par.at[:, j].set(params[k].astype(jnp.float32))

    odb = jnp.dtype(operand_dtype).itemsize
    outb = jnp.dtype(out_dtype).itemsize
    # Explicit VMEM budget: default scoped limit (~16/32 MiB) is far below physical VMEM.
    est = (kg_max * s * odb                               # shared im2col scratch
           + 2 * cin * s * 4 + 2 * cout * s * outb        # double-buffered in/out blocks
           + 2 * 3 * cout * (kg0_pad + kg1_pad) * odb     # weight blocks
           + 2 * cout * 128 * 4                           # packed params (lane-padded)
           + cout * s * (odb + 3 * 4))                    # h0 + live f32 temporaries
    vmem_limit = min(max(int(est * 1.5) + (4 << 20), 32 << 20), 100 << 20)
    try:
        vmem_limit = min(vmem_limit, int(pltpu.get_tpu_info().vmem_capacity_bytes * 0.9))
    except Exception:
        pass

    flops = 2 * n * s * 27 * (cin * cout + cout * cout) + 16 * n * cout * s
    bytes_accessed = (n * cin * s * 4 + n * cout * s * outb
                      + 3 * cout * (kg0_pad + kg1_pad) * odb + cout * 8 * 4)

    kernel = functools.partial(
        _convblock_kernel, d=d, h=h, w=w, cin=cin, cout=cout,
        kg0_pad=kg0_pad, kg1_pad=kg1_pad, group_taps=group_taps)

    rep2 = lambda i: (0, 0)
    rep3 = lambda i: (0, 0, 0)
    out = pl.pallas_call(
        kernel,
        out_shape=jax.ShapeDtypeStruct((n, cout, s), out_dtype),
        grid_spec=pltpu.PrefetchScalarGridSpec(
            num_scalar_prefetch=0,
            grid=(n,),                                           # one sample per grid step
            in_specs=[
                pl.BlockSpec((1, cin, s), lambda i: (i, 0, 0)),  # sample input
                pl.BlockSpec((3, cout, kg0_pad), rep3),          # conv0 weights, kd-grouped
                pl.BlockSpec((3, cout, kg1_pad), rep3),          # conv1 weights, kd-grouped
                pl.BlockSpec((cout, 8), rep2),                   # packed bias/gamma/beta
            ],
            out_specs=pl.BlockSpec((1, cout, s), lambda i: (i, 0, 0)),  # lane-dense store
            scratch_shapes=[pltpu.VMEM((kg_max, s), operand_dtype)],    # shared im2col scratch
        ),
        compiler_params=pltpu.CompilerParams(
            dimension_semantics=("parallel",),                   # batch across v7x TensorCores
            vmem_limit_bytes=int(vmem_limit)),
        cost_estimate=pl.CostEstimate(flops=int(flops),
                                      transcendentals=int(2 * n * cout),
                                      bytes_accessed=int(bytes_accessed)),
    )(x.reshape(n, cin, s), w0, w1, par)
    return out.reshape(n, cout, d, h, w)


# --------------------------------------------------------------------------------------
# Pure-XLA reference (ground truth for the PyTorch ConvBlock math)
# --------------------------------------------------------------------------------------
def _ref_convblock(x, p):
    def layer(x, w, b, g, be):
        y = jax.lax.conv_general_dilated(
            x, w, window_strides=(1, 1, 1),
            padding=((1, 1), (1, 1), (1, 1)),
            dimension_numbers=("NCDHW", "OIDHW", "NCDHW"))
        y = y + b.reshape(1, -1, 1, 1, 1)
        mean = jnp.mean(y, axis=(2, 3, 4), keepdims=True)
        var = jnp.mean(jnp.square(y - mean), axis=(2, 3, 4), keepdims=True)
        y = (y - mean) * jax.lax.rsqrt(var + EPS)
        y = y * g.reshape(1, -1, 1, 1, 1) + be.reshape(1, -1, 1, 1, 1)
        return jnp.where(y >= 0, y, NEG_SLOPE * y)

    hid = layer(x, p["conv0_w"], p["conv0_b"], p["norm0_g"], p["norm0_b"])
    return layer(hid, p["conv1_w"], p["conv1_b"], p["norm1_g"], p["norm1_b"])


def init_params(key, in_ch, out_ch):
    ks = jax.random.split(key, 8)
    return {
        # PyTorch Conv3d weight layout: (Cout, Cin, kD, kH, kW)
        "conv0_w": 0.2 * jax.random.normal(ks[0], (out_ch, in_ch, 3, 3, 3), jnp.float32),
        "conv0_b": 0.1 * jax.random.normal(ks[1], (out_ch,), jnp.float32),
        "norm0_g": 1.0 + 0.1 * jax.random.normal(ks[2], (out_ch,), jnp.float32),
        "norm0_b": 0.1 * jax.random.normal(ks[3], (out_ch,), jnp.float32),
        "conv1_w": 0.05 * jax.random.normal(ks[4], (out_ch, out_ch, 3, 3, 3), jnp.float32),
        "conv1_b": 0.1 * jax.random.normal(ks[5], (out_ch,), jnp.float32),
        "norm1_g": 1.0 + 0.1 * jax.random.normal(ks[6], (out_ch,), jnp.float32),
        "norm1_b": 0.1 * jax.random.normal(ks[7], (out_ch,), jnp.float32),
    }


if __name__ == "__main__":
    _calibrate_roll_sign()   # resolve pltpu.roll convention before tracing the main fn

    key = jax.random.PRNGKey(0)
    kp, kx = jax.random.split(key)
    in_ch, out_ch = 1, 32
    N, D, H, W = 2, 8, 8, 8

    params = init_params(kp, in_ch, out_ch)
    x = jax.random.normal(kx, (N, in_ch, D, H, W), jnp.float32)

    # Default (perf) mode: bf16 MXU operands + bf16 patch build, f32 accumulation/epilogue.
    fwd_bf16 = jax.jit(functools.partial(convblock_forward, operand_dtype=jnp.bfloat16))
    out = jax.block_until_ready(fwd_bf16(x, params))
    assert out.shape == (N, out_ch, D, H, W)

    ref = jax.block_until_ready(jax.jit(_ref_convblock)(x, params))
    # bf16 operands -> ~5e-2 agreement with the f32 reference is expected (not a regression).
    assert jnp.allclose(out, ref, atol=5e-2, rtol=5e-2), "bf16 kernel mismatch vs reference"

    # f32-operand mode (also the recommended v5e configuration) for a tight numerical check.
    fwd_f32 = jax.jit(functools.partial(convblock_forward, operand_dtype=jnp.float32))
    out32 = jax.block_until_ready(fwd_f32(x, params))
    assert jnp.allclose(out32, ref, atol=3e-3, rtol=3e-3), "f32 kernel mismatch vs reference"

    print("KERNEL_OK")
</pallas_src>

<mosaic_0001>
module attributes {stable_mosaic.version = 11 : i64} {
  func.func @_roll_probe_kernel(%arg0: memref<1x256xf32, #tpu.memory_space<vmem>>, %arg1: memref<1x256xf32, #tpu.memory_space<vmem>>) attributes {dimension_semantics = [], scalar_prefetch = 0 : i64, scratch_operands = 0 : i64, tpu.core_type = #tpu.core_type<tc>} {
    %c0 = arith.constant 0 : index
    %c0_0 = arith.constant 0 : index
    %0 = vector.load %arg0[%c0, %c0_0] : memref<1x256xf32, #tpu.memory_space<vmem>>, vector<1x256xf32>
    %c3_i32 = arith.constant 3 : i32
    %1 = tpu.dynamic_rotate %0 by %c3_i32 dim 1 : vector<1x256xf32>, i32 -> vector<1x256xf32>
    %c0_1 = arith.constant 0 : index
    %c0_2 = arith.constant 0 : index
    %2 = vector.load %arg1[%c0_1, %c0_2] : memref<1x256xf32, #tpu.memory_space<vmem>>, vector<1x256xf32>
    tpu.vector_store %arg1[%c0_1, %c0_2], %1 {strides = array<i32>} : memref<1x256xf32, #tpu.memory_space<vmem>>, vector<1x256xf32>,
    return
  }
}

</mosaic_0001>

<llo_original>
// kernel: tpu_custom_call.1
$region0: #{tpu_custom_call.1}
  #allocation0 [shape = 'u32[]', space=smem, size = 0x4, offset = 0x4, fixed_abs, tag = 'smem constant byte address 0x4 - core index']
  #allocation1 [shape = 'u32[144,128]{1,0:T(1,128)}', space=vmem, size = 0x12000, scoped, tag = 'internal scratch']
  %s0 = inlined_call_operand.hbm [shape: f32[1,256], index: 0, kind: input, shape index: {}]
  %s1 = inlined_call_operand.hbm [shape: f32[1,256], index: 1, kind: output, shape index: {}]
  %s2 = sld [smem:[#allocation0]]
  $region18: #{tpu_custom_call.1} parent=0
    _
  %s4 = ssub.s32 1, %s2
  %s5 = scalar_select 0, %s4, %s2
  $region1: #{tpu_custom_call.1} parent=0
    #allocation2 [shape = 'u8[1024]{0}', space=vmem, size = 0x400, scoped, tag = 'input window, operand 0, single buffered']
    #allocation3 [shape = 's32[1]{0}', space=sflag, size = 0x4, scoped, tag = 'scoped memory for tpu_custom_call.1']
    #allocation4 [shape = 's32[1]{0}', space=sflag, size = 0x4, scoped, tag = 'scoped memory for tpu_custom_call.1']
    #allocation5 [shape = 'u8[1024]{0}', space=vmem, size = 0x400, scoped, tag = 'output window, operand 0, single buffered']
    %6 = vsyncpa [#allocation3], 0
    %7 = vsyncpa [#allocation4], 0
    // Predicated region
    $region2: #{tpu_custom_call.1} parent=1 // pred_check
      _
    $region3: #{tpu_custom_call.1} parent=1 // pred_check_branch
      %9 = sbr.rel (0) target = $region5
    $region4: #{tpu_custom_call.1} parent=1 // pred_region
      %s11 = ssub.s32 32, 32
      %12 = vsyncadd [#allocation3], %s11
      %s14 = sshll.u32 [#allocation2], 4
      %s15 = int_to_ptr.vmem [resolvable:$true] %s14
      %17 = dma.hbm_to_vmem [thread:$0]  %s0, 32, %s15, [#allocation3]
    $region5: #{tpu_custom_call.1} parent=1 // pred_fallthru
      _
    // Predicated region
    $region6: #{tpu_custom_call.1} parent=1 // pred_check
      _
    $region7: #{tpu_custom_call.1} parent=1 // pred_check_branch
      %19 = sbr.rel (0) target = $region9
    $region8: #{tpu_custom_call.1} parent=1 // pred_region
      %20 = dma.done [#allocation3], 32
    $region9: #{tpu_custom_call.1} parent=1 // pred_fallthru
      _
    %v21 = vld [vmem:[#allocation2] sm:$0x3]
    %v23 = vlaneseq
    %v24 = vshrl.u32 %v23, 7
    %v25 = vsub.s32 0, %v24
    %v26 = vrot.slane %v21, %v25
    %v27 = vlaneseq
    %v28 = vshrl.u32 %v27, 7
    %v29 = vsub.s32 1, %v28
    %v30 = vrot.slane %v21, %v29
    %33 = vrot.lane.b32.xlu0 %v26, 3
    %v34 = vpop.permute.xlu0 %33
    %35 = vrot.lane.b32.xlu0 %v30, 3
    %v36 = vpop.permute.xlu0 %35
    %v37 = vlaneseq
    %v38 = vand.u32 %v37, 127
    %vm39 = vcmp.lt.s32.totalorder %v38, 3
    %v40 = vsel %vm39, %v34, %v36
    %v41 = vsel %vm39, %v36, %v34
    %v44 = vcombine.low %v41, %v40
    %v46 = vunpack.c.l.s4 1966171168
    %v47 = vunpack.c.0.s8 %v46
    %v48 = vlaneseq
    %v49 = vshrl.u32 %v48, 7
    %v50 = vsub.s32 %v47, %v49
    %v51 = vrot.slane %v44, %v50
    %v53 = vunpack.c.l.s4 1966171168
    %v54 = vunpack.c.0.s8 %v53
    %v55 = vlaneseq
    %v56 = vshrl.u32 %v55, 7
    %v57 = vsub.s32 %v54, %v56
    %v58 = vrot.slane %v51, %v57
    %v60 = vlaneseq
    %vm61 = vcmp.ge.s32.totalorder %v60, 0
    %vm62 = vcmp.lt.s32.totalorder %v60, 256
    %vm63 = vmand %vm61, %vm62
    %64 = vst.msk [vmem:[#allocation5] sm:$0x3] %vm63, %v58
    // Predicated region
    $region10: #{tpu_custom_call.1} parent=1 // pred_check
      _
    $region11: #{tpu_custom_call.1} parent=1 // pred_check_branch
      %66 = sbr.rel (0) target = $region13
    $region12: #{tpu_custom_call.1} parent=1 // pred_region
      %s68 = ssub.s32 32, 32
      %69 = vsyncadd [#allocation4], %s68
      %s71 = sshll.u32 [#allocation5], 4
      %s72 = int_to_ptr.vmem [resolvable:$true] %s71
      %74 = dma.vmem_to_hbm [thread:$0]  %s72, 32, %s1, [#allocation4]
    $region13: #{tpu_custom_call.1} parent=1 // pred_fallthru
      _
    // Predicated region
    $region14: #{tpu_custom_call.1} parent=1 // pred_check
      _
    $region15: #{tpu_custom_call.1} parent=1 // pred_check_branch
      %76 = sbr.rel (0) target = $region17
    $region16: #{tpu_custom_call.1} parent=1 // pred_region
      %77 = dma.done [#allocation4], 32
    $region17: #{tpu_custom_call.1} parent=1 // pred_fallthru
      _
    %78 = vsyncpa [#allocation3], 1
    %79 = vsyncpa [#allocation4], 1

</llo_original>
